<compile_context>
chip_gen: v6e
topology: v6e:2x2x1
jax: 0.10.0
libtpu: 0.0.40
codegen_flags: <defaults>
</compile_context>

<pallas_src>
import jax
import jax.numpy as jnp
from jax.experimental import pallas as pl
from jax.experimental.pallas import tpu as pltpu

NEGATIVE_SLOPE = 0.67
PAD = 1  # ConvTranspose2d padding


def _convt1x1_leaky_kernel(x_ref, wt_ref, b_ref, o_ref):
    """x_ref : (N, Cin, H*W)   VMEM f32  -- free row-major view of NCHW input
       wt_ref: (Cout, Cin)     VMEM f32  -- conv weight, transposed
       b_ref : (1, Cout, 1)    VMEM f32  -- bias
       o_ref : (N, Cout, H*W)  VMEM f32  -- NCHW-flattened output (full frames)"""
    n, cin, hw = x_ref.shape
    cout = wt_ref.shape[0]

    x = x_ref[...]                                             # (N, Cin, HW)
    # One hoisted broadcast of the (Cout, Cin) weight across the batch dim, then a
    # single batched MXU contraction: out[n, o, p] = sum_i wt[o, i] * x[n, i, p].
    wt = jnp.broadcast_to(wt_ref[...][None, :, :], (n, cout, cin))
    y = jax.lax.dot_general(
        wt, x,
        dimension_numbers=(((2,), (1,)), ((0,), (0,))),
        preferred_element_type=jnp.float32,
    )                                                          # (N, Cout, HW)

    # Epilogue: bias (single broadcast add) + LeakyReLU, stored lane-dense.
    y = y + b_ref[...]
    o_ref[...] = jnp.where(y > 0, y, y * NEGATIVE_SLOPE)


@jax.jit
def model_forward(x_nchw, weight, bias):
    """ConvTranspose2d(10,20,1,stride=1,padding=1) + LeakyReLU(0.67), NCHW in/out."""
    n, cin, h, w = x_nchw.shape
    cout = weight.shape[1]
    ho, wo = h - 2 * PAD, w - 2 * PAD

    x2 = x_nchw.reshape(n, cin, h * w)          # free reshape (contiguous NCHW)
    wt = weight.reshape(cin, cout).T            # tiny (Cout, Cin) transpose
    b3 = bias.reshape(1, cout, 1)

    y = pl.pallas_call(
        _convt1x1_leaky_kernel,
        out_shape=jax.ShapeDtypeStruct((n, cout, h * w), jnp.float32),
        in_specs=[
            pl.BlockSpec(memory_space=pltpu.MemorySpace.VMEM),  # x  (whole array)
            pl.BlockSpec(memory_space=pltpu.MemorySpace.VMEM),  # weight
            pl.BlockSpec(memory_space=pltpu.MemorySpace.VMEM),  # bias
        ],
        out_specs=pl.BlockSpec(memory_space=pltpu.MemorySpace.VMEM),
    )(x2, wt, b3)

    # ConvTranspose2d with 1x1 kernel & padding=1 keeps only the interior window:
    # free reshape back to NCHW + one tiny XLA border slice (LeakyReLU is
    # elementwise, so cropping after the activation is exact).
    return y.reshape(n, cout, h, w)[:, :, PAD:PAD + ho, PAD:PAD + wo]


if __name__ == "__main__":
    key = jax.random.PRNGKey(0)
    kx, kw, kb = jax.random.split(key, 3)
    # input matching the module's x4 = torch.randn(6, 10, 8, 8)
    x4 = jax.random.normal(kx, (6, 10, 8, 8), dtype=jnp.float32)
    # deterministic ConvTranspose2d(10, 20, 1) parameters (weight layout (in, out, 1, 1))
    weight = jax.random.normal(kw, (10, 20, 1, 1), dtype=jnp.float32) * 0.1
    bias = jax.random.normal(kb, (20,), dtype=jnp.float32) * 0.1

    out = model_forward(x4, weight, bias)
    jax.block_until_ready(out)
    assert out.shape == (6, 20, 6, 6), out.shape

    # plain-JAX reference (explicit f32 broadcast-sum)
    x_crop = x4[:, :, 1:7, 1:7]
    w2d = weight.reshape(10, 20)
    ref = (x_crop[:, :, None, :, :] * w2d[None, :, :, None, None]).sum(axis=1)
    ref = ref + bias[None, :, None, None]
    ref = jnp.where(ref > 0, ref, ref * NEGATIVE_SLOPE)
    assert jnp.allclose(out, ref, atol=1e-5, rtol=1e-5), float(jnp.max(jnp.abs(out - ref)))

    print("KERNEL_OK")
</pallas_src>

<mosaic_0001>
module attributes {stable_mosaic.version = 11 : i64} {
  func.func @_convt1x1_leaky_kernel(%arg0: memref<6x10x64xf32, #tpu.memory_space<vmem>>, %arg1: memref<20x10xf32, #tpu.memory_space<vmem>>, %arg2: memref<1x20x1xf32, #tpu.memory_space<vmem>>, %arg3: memref<6x20x64xf32, #tpu.memory_space<vmem>>) attributes {dimension_semantics = [], scalar_prefetch = 0 : i64, scratch_operands = 0 : i64, tpu.core_type = #tpu.core_type<tc>} {
    %c0 = arith.constant 0 : index
    %c0_0 = arith.constant 0 : index
    %c0_1 = arith.constant 0 : index
    %0 = vector.load %arg0[%c0, %c0_0, %c0_1] : memref<6x10x64xf32, #tpu.memory_space<vmem>>, vector<6x10x64xf32>
    %c0_2 = arith.constant 0 : index
    %c0_3 = arith.constant 0 : index
    %1 = vector.load %arg1[%c0_2, %c0_3] : memref<20x10xf32, #tpu.memory_space<vmem>>, vector<20x10xf32>
    %2 = vector.shape_cast %1 : vector<20x10xf32> to vector<1x20x10xf32>
    %3 = vector.shape_cast %2 : vector<1x20x10xf32> to vector<1x20x10xf32>
    %4 = vector.broadcast %3 : vector<1x20x10xf32> to vector<6x20x10xf32>
    %cst = arith.constant dense<0.000000e+00> : vector<6x20x64xf32>
    %5 = tpu.matmul %4, %0, %cst {dimension_numbers = #tpu.dot_dimension_numbers<[2], [1], [1], [2], [0, 0, 0, 1, 1, 2], [0], [0]>} : vector<6x20x10xf32>, vector<6x10x64xf32>, vector<6x20x64xf32> -> vector<6x20x64xf32>
    %c0_4 = arith.constant 0 : index
    %c0_5 = arith.constant 0 : index
    %c0_6 = arith.constant 0 : index
    %6 = vector.load %arg2[%c0_4, %c0_5, %c0_6] : memref<1x20x1xf32, #tpu.memory_space<vmem>>, vector<1x20x1xf32>
    %7 = vector.broadcast %6 : vector<1x20x1xf32> to vector<6x20x64xf32>
    %8 = arith.addf %5, %7 : vector<6x20x64xf32>
    %cst_7 = arith.constant 0.000000e+00 : f32
    %9 = vector.broadcast %cst_7 : f32 to vector<6x20x64xf32>
    %10 = arith.cmpf ogt, %8, %9 : vector<6x20x64xf32>
    %cst_8 = arith.constant 6.700000e-01 : f32
    %11 = vector.broadcast %cst_8 : f32 to vector<6x20x64xf32>
    %12 = arith.mulf %8, %11 : vector<6x20x64xf32>
    %13 = arith.select %10, %8, %12 : vector<6x20x64xi1>, vector<6x20x64xf32>
    %c0_9 = arith.constant 0 : index
    %c0_10 = arith.constant 0 : index
    %c0_11 = arith.constant 0 : index
    %14 = vector.load %arg3[%c0_9, %c0_10, %c0_11] : memref<6x20x64xf32, #tpu.memory_space<vmem>>, vector<6x20x64xf32>
    tpu.vector_store %arg3[%c0_9, %c0_10, %c0_11], %13 {strides = array<i32>} : memref<6x20x64xf32, #tpu.memory_space<vmem>>, vector<6x20x64xf32>,
    return
  }
}

</mosaic_0001>

<llo_original>
// kernel: model_forward.1
$region0: #{model_forward.1}
  #allocation0 [shape = 'u32[]', space=smem, size = 0x4, offset = 0x4, fixed_abs, tag = 'smem constant byte address 0x4 - core index']
  #allocation1 [shape = 'u32[144,128]{1,0:T(1,128)}', space=vmem, size = 0x12000, scoped, tag = 'internal scratch']
  %s0 = inlined_call_operand.vmem [shape: f32[6,10,64], index: 0, kind: input, shape index: {}]
  %s1 = inlined_call_operand.vmem [shape: f32[20,10], index: 1, kind: input, shape index: {}]
  %s2 = inlined_call_operand.vmem [shape: f32[1,20,1], index: 2, kind: input, shape index: {}]
  %s3 = inlined_call_operand.vmem [shape: f32[6,20,64], index: 3, kind: output, shape index: {}]
  %s4 = sld [smem:[#allocation0]]
  $region22: #{model_forward.1} parent=0
    _
  %s6 = ssub.s32 1, %s4
  %s7 = scalar_select 0, %s6, %s4
  // Predicated region
  $region2: #{model_forward.1} parent=0 // pred_check
    _
  $region3: #{model_forward.1} parent=0 // pred_check_branch
    %9 = sbr.rel (0) target = $region5
  $region4: #{model_forward.1} parent=0 // pred_region
    _
  $region5: #{model_forward.1} parent=0 // pred_fallthru
    _
  // Predicated region
  $region6: #{model_forward.1} parent=0 // pred_check
    _
  $region7: #{model_forward.1} parent=0 // pred_check_branch
    %11 = sbr.rel (0) target = $region9
  $region8: #{model_forward.1} parent=0 // pred_region
    _
  $region9: #{model_forward.1} parent=0 // pred_fallthru
    _
  // Predicated region
  $region10: #{model_forward.1} parent=0 // pred_check
    _
  $region11: #{model_forward.1} parent=0 // pred_check_branch
    %13 = sbr.rel (0) target = $region13
  $region12: #{model_forward.1} parent=0 // pred_region
    _
  $region13: #{model_forward.1} parent=0 // pred_fallthru
    _
  %v14 = vld [vmem:[%s0] sm:$0xff]
  %v15 = vld [vmem:[%s0 + $0x8] sm:$0x3]
  %v16 = vld [vmem:[%s0 + $0x10] sm:$0xff]
  %v17 = vld [vmem:[%s0 + $0x18] sm:$0x3]
  %v18 = vld [vmem:[%s0 + $0x20] sm:$0xff]
  %v19 = vld [vmem:[%s0 + $0x28] sm:$0x3]
  %v20 = vld [vmem:[%s0 + $0x30] sm:$0xff]
  %v21 = vld [vmem:[%s0 + $0x38] sm:$0x3]
  %v22 = vld [vmem:[%s0 + $0x40] sm:$0xff]
  %v23 = vld [vmem:[%s0 + $0x48] sm:$0x3]
  %v24 = vld [vmem:[%s0 + $0x50] sm:$0xff]
  %v25 = vld [vmem:[%s0 + $0x58] sm:$0x3]
  %v26 = vld [vmem:[%s1] sm:$0xff]
  %v27 = vld [vmem:[%s1 + $0x8] sm:$0xff]
  %v28 = vld [vmem:[%s1 + $0x10] sm:$0xf]
  %v29 = vld [vmem:[%s2] sm:$0xff]
  %v30 = vld [vmem:[%s2 + $0x8] sm:$0xff]
  %v31 = vld [vmem:[%s2 + $0x10] sm:$0xf]
  %33 = vset.pattern.permute.xlu0 0
  %34 = vperm.xlu0 %33, %v29
  %v35 = vpop.permute.xlu0 %34
  %38 = vset.pattern.permute.xlu0 0
  %39 = vperm.xlu0 %38, %v30
  %v40 = vpop.permute.xlu0 %39
  %43 = vset.pattern.permute.xlu0 0
  %44 = vperm.xlu0 %43, %v31
  %v45 = vpop.permute.xlu0 %44
  %vm47 = vcmask 80896
  %v49 = vsel %vm47, %v26, 0
  %v52 = vsel %vm47, %v27, 0
  %v55 = vsel %vm47, %v28, 0
  %vm57 = vcmask 1041408
  %v59 = vsel %vm57, %v15, 0
  %61 = vmatprep.subr.mxu0 0.0
  %62 = vmatpush1.msra.mxu0 0.0
  %63 = vmatprep.subr.mxu0 0.0
  %64 = vmatpush1.msra.mxu0 0.0
  %65 = vmatprep.subr.mxu0 0.0
  %66 = vmatpush1.msra.mxu0 0.0
  %67 = vmatprep.subr.mxu0 0.0
  %68 = vmatpush1.msra.mxu0 0.0
  %69 = vmatprep.subr.mxu0 0.0
  %70 = vmatpush1.msra.mxu0 0.0
  %71 = vmatprep.subr.mxu0 0.0
  %72 = vmatpush1.msra.mxu0 0.0
  %73 = vmatprep.subr.mxu0 0.0
  %74 = vmatpush1.msra.mxu0 0.0
  %75 = vmatprep.subr.mxu0 0.0
  %76 = vmatpush1.msra.mxu0 0.0
  %77 = vmatprep.subr.mxu0 0.0
  %78 = vmatpush1.msra.mxu0 0.0
  %79 = vmatprep.subr.mxu0 0.0
  %80 = vmatpush1.msra.mxu0 0.0
  %81 = vmatprep.subr.mxu0 0.0
  %82 = vmatpush1.msra.mxu0 0.0
  %83 = vmatprep.subr.mxu0 0.0
  %84 = vmatpush1.msra.mxu0 0.0
  %85 = vmatprep.subr.mxu0 0.0
  %86 = vmatpush1.msra.mxu0 0.0
  %87 = vmatprep.subr.mxu0 0.0
  %88 = vmatpush1.msra.mxu0 0.0
  %89 = vmatprep.subr.mxu0 0.0
  %90 = vmatpush1.msra.mxu0 %v59
  %91 = vmatprep.subr.mxu0 0.0
  %92 = vmatpush1.msra.mxu0 %v14
  %93 = vmatprep.subr.mxu0 0.0
  %94 = vmatpush2.msra.mxu0 0.0
  %95 = vmatprep.subr.mxu0 0.0
  %96 = vmatpush2.msra.mxu0 0.0
  %97 = vmatprep.subr.mxu0 0.0
  %98 = vmatpush2.msra.mxu0 0.0
  %99 = vmatprep.subr.mxu0 0.0
  %100 = vmatpush2.msra.mxu0 0.0
  %101 = vmatprep.subr.mxu0 0.0
  %102 = vmatpush2.msra.mxu0 0.0
  %103 = vmatprep.subr.mxu0 0.0
  %104 = vmatpush2.msra.mxu0 0.0
  %105 = vmatprep.subr.mxu0 0.0
  %106 = vmatpush2.msra.mxu0 0.0
  %107 = vmatprep.subr.mxu0 0.0
  %108 = vmatpush2.msra.mxu0 0.0
  %109 = vmatprep.subr.mxu0 0.0
  %110 = vmatpush2.msra.mxu0 0.0
  %111 = vmatprep.subr.mxu0 0.0
  %112 = vmatpush2.msra.mxu0 0.0
  %113 = vmatprep.subr.mxu0 0.0
  %114 = vmatpush2.msra.mxu0 0.0
  %115 = vmatprep.subr.mxu0 0.0
  %116 = vmatpush2.msra.mxu0 0.0
  %117 = vmatprep.subr.mxu0 0.0
  %118 = vmatpush2.msra.mxu0 0.0
  %119 = vmatprep.subr.mxu0 0.0
  %120 = vmatpush2.msra.mxu0 0.0
  %121 = vmatprep.subr.mxu0 0.0
  %122 = vmatpush2.msra.mxu0 0.0
  %123 = vmatprep.subr.mxu0 0.0
  %124 = vmatpush2.msra.mxu0 0.0
  %125 = vmatprep.mubr.f32.mxu0 0.0
  %126 = vmatmul.mubr.f32.gmra.mxu0 %v49
  %v127 = vpop.f32.mrf.mxu0
  %v128 = vadd.f32 %v35, %v127
  %v129 = vpop.f32.mrf.mxu0
  %130 = vmatprep.mubr.f32.mxu0 0.0
  %131 = vmatmul.mubr.f32.gmra.mxu0 %v52
  %v132 = vpop.f32.mrf.mxu0
  %v133 = vadd.f32 %v40, %v132
  %v134 = vpop.f32.mrf.mxu0
  %135 = vmatprep.mubr.f32.mxu0 0.0
  %136 = vmatmul.mubr.f32.gmra.mxu0 %v55
  %v137 = vpop.f32.mrf.mxu0
  %v138 = vadd.f32 %v45, %v137
  %v139 = vpop.f32.mrf.mxu0
  %140 = vdwg.mxu0
  %v142 = vsel %vm57, %v17, 0
  %144 = vmatprep.subr.mxu0 0.0
  %145 = vmatpush1.msra.mxu0 0.0
  %146 = vmatprep.subr.mxu0 0.0
  %147 = vmatpush1.msra.mxu0 0.0
  %148 = vmatprep.subr.mxu0 0.0
  %149 = vmatpush1.msra.mxu0 0.0
  %150 = vmatprep.subr.mxu0 0.0
  %151 = vmatpush1.msra.mxu0 0.0
  %152 = vmatprep.subr.mxu0 0.0
  %153 = vmatpush1.msra.mxu0 0.0
  %154 = vmatprep.subr.mxu0 0.0
  %155 = vmatpush1.msra.mxu0 0.0
  %156 = vmatprep.subr.mxu0 0.0
  %157 = vmatpush1.msra.mxu0 0.0
  %158 = vmatprep.subr.mxu0 0.0
  %159 = vmatpush1.msra.mxu0 0.0
  %160 = vmatprep.subr.mxu0 0.0
  %161 = vmatpush1.msra.mxu0 0.0
  %162 = vmatprep.subr.mxu0 0.0
  %163 = vmatpush1.msra.mxu0 0.0
  %164 = vmatprep.subr.mxu0 0.0
  %165 = vmatpush1.msra.mxu0 0.0
  %166 = vmatprep.subr.mxu0 0.0
  %167 = vmatpush1.msra.mxu0 0.0
  %168 = vmatprep.subr.mxu0 0.0
  %169 = vmatpush1.msra.mxu0 0.0
  %170 = vmatprep.subr.mxu0 0.0
  %171 = vmatpush1.msra.mxu0 0.0
  %172 = vmatprep.subr.mxu0 0.0
  %173 = vmatpush1.msra.mxu0 %v142
  %174 = vmatprep.subr.mxu0 0.0
  %175 = vmatpush1.msra.mxu0 %v16
  %176 = vmatprep.subr.mxu0 0.0
  %177 = vmatpush2.msra.mxu0 0.0
  %178 = vmatprep.subr.mxu0 0.0
  %179 = vmatpush2.msra.mxu0 0.0
  %180 = vmatprep.subr.mxu0 0.0
  %181 = vmatpush2.msra.mxu0 0.0
  %182 = vmatprep.subr.mxu0 0.0
  %183 = vmatpush2.msra.mxu0 0.0
  %184 = vmatprep.subr.mxu0 0.0
  %185 = vmatpush2.msra.mxu0 0.0
  %186 = vmatprep.subr.mxu0 0.0
  %187 = vmatpush2.msra.mxu0 0.0
  %188 = vmatprep.subr.mxu0 0.0
  %189 = vmatpush2.msra.mxu0 0.0
  %190 = vmatprep.subr.mxu0 0.0
  %191 = vmatpush2.msra.mxu0 0.0
  %192 = vmatprep.subr.mxu0 0.0
  %193 = vmatpush2.msra.mxu0 0.0
  %194 = vmatprep.subr.mxu0 0.0
  %195 = vmatpush2.msra.mxu0 0.0
  %196 = vmatprep.subr.mxu0 0.0
  %197 = vmatpush2.msra.mxu0 0.0
  %198 = vmatprep.subr.mxu0 0.0
  %199 = vmatpush2.msra.mxu0 0.0
  %200 = vmatprep.subr.mxu0 0.0
  %201 = vmatpush2.msra.mxu0 0.0
  %202 = vmatprep.subr.mxu0 0.0
  %203 = vmatpush2.msra.mxu0 0.0
  %204 = vmatprep.subr.mxu0 0.0
  %205 = vmatpush2.msra.mxu0 0.0
  %206 = vmatprep.subr.mxu0 0.0
  %207 = vmatpush2.msra.mxu0 0.0
  %208 = vmatprep.mubr.f32.mxu0 0.0
  %209 = vmatmul.mubr.f32.gmra.mxu0 %v49
  %v210 = vpop.f32.mrf.mxu0
  %v211 = vadd.f32 %v35, %v210
  %v212 = vpop.f32.mrf.mxu0
  %213 = vmatprep.mubr.f32.mxu0 0.0
  %214 = vmatmul.mubr.f32.gmra.mxu0 %v52
  %v215 = vpop.f32.mrf.mxu0
  %v216 = vadd.f32 %v40, %v215
  %v217 = vpop.f32.mrf.mxu0
  %218 = vmatprep.mubr.f32.mxu0 0.0
  %219 = vmatmul.mubr.f32.gmra.mxu0 %v55
  %v220 = vpop.f32.mrf.mxu0
  %v221 = vadd.f32 %v45, %v220
  %v222 = vpop.f32.mrf.mxu0
  %223 = vdwg.mxu0
  %v225 = vsel %vm57, %v19, 0
  %227 = vmatprep.subr.mxu0 0.0
  %228 = vmatpush1.msra.mxu0 0.0
  %229 = vmatprep.subr.mxu0 0.0
  %230 = vmatpush1.msra.mxu0 0.0
  %231 = vmatprep.subr.mxu0 0.0
  %232 = vmatpush1.msra.mxu0 0.0
  %233 = vmatprep.subr.mxu0 0.0
  %234 = vmatpush1.msra.mxu0 0.0
  %235 = vmatprep.subr.mxu0 0.0
  %236 = vmatpush1.msra.mxu0 0.0
  %237 = vmatprep.subr.mxu0 0.0
  %238 = vmatpush1.msra.mxu0 0.0
  %239 = vmatprep.subr.mxu0 0.0
  %240 = vmatpush1.msra.mxu0 0.0
  %241 = vmatprep.subr.mxu0 0.0
  %242 = vmatpush1.msra.mxu0 0.0
  %243 = vmatprep.subr.mxu0 0.0
  %244 = vmatpush1.msra.mxu0 0.0
  %245 = vmatprep.subr.mxu0 0.0
  %246 = vmatpush1.msra.mxu0 0.0
  %247 = vmatprep.subr.mxu0 0.0
  %248 = vmatpush1.msra.mxu0 0.0
  %249 = vmatprep.subr.mxu0 0.0
  %250 = vmatpush1.msra.mxu0 0.0
  %251 = vmatprep.subr.mxu0 0.0
  %252 = vmatpush1.msra.mxu0 0.0
  %253 = vmatprep.subr.mxu0 0.0
  %254 = vmatpush1.msra.mxu0 0.0
  %255 = vmatprep.subr.mxu0 0.0
  %256 = vmatpush1.msra.mxu0 %v225
  %257 = vmatprep.subr.mxu0 0.0
  %258 = vmatpush1.msra.mxu0 %v18
  %259 = vmatprep.subr.mxu0 0.0
  %260 = vmatpush2.msra.mxu0 0.0
  %261 = vmatprep.subr.mxu0 0.0
  %262 = vmatpush2.msra.mxu0 0.0
  %263 = vmatprep.subr.mxu0 0.0
  %264 = vmatpush2.msra.mxu0 0.0
  %265 = vmatprep.subr.mxu0 0.0
  %266 = vmatpush2.msra.mxu0 0.0
  %267 = vmatprep.subr.mxu0 0.0
  %268 = vmatpush2.msra.mxu0 0.0
  %269 = vmatprep.subr.mxu0 0.0
  %270 = vmatpush2.msra.mxu0 0.0
  %271 = vmatprep.subr.mxu0 0.0
  %272 = vmatpush2.msra.mxu0 0.0
  %273 = vmatprep.subr.mxu0 0.0
  %274 = vmatpush2.msra.mxu0 0.0
  %275 = vmatprep.subr.mxu0 0.0
  %276 = vmatpush2.msra.mxu0 0.0
  %277 = vmatprep.subr.mxu0 0.0
  %278 = vmatpush2.msra.mxu0 0.0
  %279 = vmatprep.subr.mxu0 0.0
  %280 = vmatpush2.msra.mxu0 0.0
  %281 = vmatprep.subr.mxu0 0.0
  %282 = vmatpush2.msra.mxu0 0.0
  %283 = vmatprep.subr.mxu0 0.0
  %284 = vmatpush2.msra.mxu0 0.0
  %285 = vmatprep.subr.mxu0 0.0
  %286 = vmatpush2.msra.mxu0 0.0
  %287 = vmatprep.subr.mxu0 0.0
  %288 = vmatpush2.msra.mxu0 0.0
  %289 = vmatprep.subr.mxu0 0.0
  %290 = vmatpush2.msra.mxu0 0.0
  %291 = vmatprep.mubr.f32.mxu0 0.0
  %292 = vmatmul.mubr.f32.gmra.mxu0 %v49
  %v293 = vpop.f32.mrf.mxu0
  %v294 = vadd.f32 %v35, %v293
  %v295 = vpop.f32.mrf.mxu0
  %296 = vmatprep.mubr.f32.mxu0 0.0
  %297 = vmatmul.mubr.f32.gmra.mxu0 %v52
  %v298 = vpop.f32.mrf.mxu0
  %v299 = vadd.f32 %v40, %v298
  %v300 = vpop.f32.mrf.mxu0
  %301 = vmatprep.mubr.f32.mxu0 0.0
  %302 = vmatmul.mubr.f32.gmra.mxu0 %v55
  %v303 = vpop.f32.mrf.mxu0
  %v304 = vadd.f32 %v45, %v303
  %v305 = vpop.f32.mrf.mxu0
  %306 = vdwg.mxu0
  %v308 = vsel %vm57, %v21, 0
  %310 = vmatprep.subr.mxu0 0.0
  %311 = vmatpush1.msra.mxu0 0.0
  %312 = vmatprep.subr.mxu0 0.0
  %313 = vmatpush1.msra.mxu0 0.0
  %314 = vmatprep.subr.mxu0 0.0
  %315 = vmatpush1.msra.mxu0 0.0
  %316 = vmatprep.subr.mxu0 0.0
  %317 = vmatpush1.msra.mxu0 0.0
  %318 = vmatprep.subr.mxu0 0.0
  %319 = vmatpush1.msra.mxu0 0.0
  %320 = vmatprep.subr.mxu0 0.0
  %321 = vmatpush1.msra.mxu0 0.0
  %322 = vmatprep.subr.mxu0 0.0
  %323 = vmatpush1.msra.mxu0 0.0
  %324 = vmatprep.subr.mxu0 0.0
  %325 = vmatpush1.msra.mxu0 0.0
  %326 = vmatprep.subr.mxu0 0.0
  %327 = vmatpush1.msra.mxu0 0.0
  %328 = vmatprep.subr.mxu0 0.0
  %329 = vmatpush1.msra.mxu0 0.0
  %330 = vmatprep.subr.mxu0 0.0
  %331 = vmatpush1.msra.mxu0 0.0
  %332 = vmatprep.subr.mxu0 0.0
  %333 = vmatpush1.msra.mxu0 0.0
  %334 = vmatprep.subr.mxu0 0.0
  %335 = vmatpush1.msra.mxu0 0.0
  %336 = vmatprep.subr.mxu0 0.0
  %337 = vmatpush1.msra.mxu0 0.0
  %338 = vmatprep.subr.mxu0 0.0
  %339 = vmatpush1.msra.mxu0 %v308
  %340 = vmatprep.subr.mxu0 0.0
  %341 = vmatpush1.msra.mxu0 %v20
  %342 = vmatprep.subr.mxu0 0.0
  %343 = vmatpush2.msra.mxu0 0.0
  %344 = vmatprep.subr.mxu0 0.0
  %345 = vmatpush2.msra.mxu0 0.0
  %346 = vmatprep.subr.mxu0 0.0
  %347 = vmatpush2.msra.mxu0 0.0
  %348 = vmatprep.subr.mxu0 0.0
  %349 = vmatpush2.msra.mxu0 0.0
  %350 = vmatprep.subr.mxu0 0.0
  %351 = vmatpush2.msra.mxu0 0.0
  %352 = vmatprep.subr.mxu0 0.0
  %353 = vmatpush2.msra.mxu0 0.0
  %354 = vmatprep.subr.mxu0 0.0
  %355 = vmatpush2.msra.mxu0 0.0
  %356 = vmatprep.subr.mxu0 0.0
  %357 = vmatpush2.msra.mxu0 0.0
  %358 = vmatprep.subr.mxu0 0.0
  %359 = vmatpush2.msra.mxu0 0.0
  %360 = vmatprep.subr.mxu0 0.0
  %361 = vmatpush2.msra.mxu0 0.0
  %362 = vmatprep.subr.mxu0 0.0
  %363 = vmatpush2.msra.mxu0 0.0
  %364 = vmatprep.subr.mxu0 0.0
  %365 = vmatpush2.msra.mxu0 0.0
  %366 = vmatprep.subr.mxu0 0.0
  %367 = vmatpush2.msra.mxu0 0.0
  %368 = vmatprep.subr.mxu0 0.0
  %369 = vmatpush2.msra.mxu0 0.0
  %370 = vmatprep.subr.mxu0 0.0
  %371 = vmatpush2.msra.mxu0 0.0
  %372 = vmatprep.subr.mxu0 0.0
  %373 = vmatpush2.msra.mxu0 0.0
  %374 = vmatprep.mubr.f32.mxu0 0.0
  %375 = vmatmul.mubr.f32.gmra.mxu0 %v49
  %v376 = vpop.f32.mrf.mxu0
  %v377 = vadd.f32 %v35, %v376
  %v378 = vpop.f32.mrf.mxu0
  %379 = vmatprep.mubr.f32.mxu0 0.0
  %380 = vmatmul.mubr.f32.gmra.mxu0 %v52
  %v381 = vpop.f32.mrf.mxu0
  %v382 = vadd.f32 %v40, %v381
  %v383 = vpop.f32.mrf.mxu0
  %384 = vmatprep.mubr.f32.mxu0 0.0
  %385 = vmatmul.mubr.f32.gmra.mxu0 %v55
  %v386 = vpop.f32.mrf.mxu0
  %v387 = vadd.f32 %v45, %v386
  %v388 = vpop.f32.mrf.mxu0
  %389 = vdwg.mxu0
  %v391 = vsel %vm57, %v23, 0
  %393 = vmatprep.subr.mxu0 0.0
  %394 = vmatpush1.msra.mxu0 0.0
  %395 = vmatprep.subr.mxu0 0.0
  %396 = vmatpush1.msra.mxu0 0.0
  %397 = vmatprep.subr.mxu0 0.0
  %398 = vmatpush1.msra.mxu0 0.0
  %399 = vmatprep.subr.mxu0 0.0
  %400 = vmatpush1.msra.mxu0 0.0
  %401 = vmatprep.subr.mxu0 0.0
  %402 = vmatpush1.msra.mxu0 0.0
  %403 = vmatprep.subr.mxu0 0.0
  %404 = vmatpush1.msra.mxu0 0.0
  %405 = vmatprep.subr.mxu0 0.0
  %406 = vmatpush1.msra.mxu0 0.0
  %407 = vmatprep.subr.mxu0 0.0
  %408 = vmatpush1.msra.mxu0 0.0
  %409 = vmatprep.subr.mxu0 0.0
  %410 = vmatpush1.msra.mxu0 0.0
  %411 = vmatprep.subr.mxu0 0.0
  %412 = vmatpush1.msra.mxu0 0.0
  %413 = vmatprep.subr.mxu0 0.0
  %414 = vmatpush1.msra.mxu0 0.0
  %415 = vmatprep.subr.mxu0 0.0
  %416 = vmatpush1.msra.mxu0 0.0
  %417 = vmatprep.subr.mxu0 0.0
  %418 = vmatpush1.msra.mxu0 0.0
  %419 = vmatprep.subr.mxu0 0.0
  %420 = vmatpush1.msra.mxu0 0.0
  %421 = vmatprep.subr.mxu0 0.0
  %422 = vmatpush1.msra.mxu0 %v391
  %423 = vmatprep.subr.mxu0 0.0
  %424 = vmatpush1.msra.mxu0 %v22
  %425 = vmatprep.subr.mxu0 0.0
  %426 = vmatpush2.msra.mxu0 0.0
  %427 = vmatprep.subr.mxu0 0.0
  %428 = vmatpush2.msra.mxu0 0.0
  %429 = vmatprep.subr.mxu0 0.0
  %430 = vmatpush2.msra.mxu0 0.0
  %431 = vmatprep.subr.mxu0 0.0
  %432 = vmatpush2.msra.mxu0 0.0
  %433 = vmatprep.subr.mxu0 0.0
  %434 = vmatpush2.msra.mxu0 0.0
  %435 = vmatprep.subr.mxu0 0.0
  %436 = vmatpush2.msra.mxu0 0.0
  %437 = vmatprep.subr.mxu0 0.0
  %438 = vmatpush2.msra.mxu0 0.0
  %439 = vmatprep.subr.mxu0 0.0
  %440 = vmatpush2.msra.mxu0 0.0
  %441 = vmatprep.subr.mxu0 0.0
  %442 = vmatpush2.msra.mxu0 0.0
  %443 = vmatprep.subr.mxu0 0.0
  %444 = vmatpush2.msra.mxu0 0.0
  %445 = vmatprep.subr.mxu0 0.0
  %446 = vmatpush2.msra.mxu0 0.0
  %447 = vmatprep.subr.mxu0 0.0
  %448 = vmatpush2.msra.mxu0 0.0
  %449 = vmatprep.subr.mxu0 0.0
  %450 = vmatpush2.msra.mxu0 0.0
  %451 = vmatprep.subr.mxu0 0.0
  %452 = vmatpush2.msra.mxu0 0.0
  %453 = vmatprep.subr.mxu0 0.0
  %454 = vmatpush2.msra.mxu0 0.0
  %455 = vmatprep.subr.mxu0 0.0
  %456 = vmatpush2.msra.mxu0 0.0
  %457 = vmatprep.mubr.f32.mxu0 0.0
  %458 = vmatmul.mubr.f32.gmra.mxu0 %v49
  %v459 = vpop.f32.mrf.mxu0
  %v460 = vadd.f32 %v35, %v459
  %v461 = vpop.f32.mrf.mxu0
  %462 = vmatprep.mubr.f32.mxu0 0.0
  %463 = vmatmul.mubr.f32.gmra.mxu0 %v52
  %v464 = vpop.f32.mrf.mxu0
  %v465 = vadd.f32 %v40, %v464
  %v466 = vpop.f32.mrf.mxu0
  %467 = vmatprep.mubr.f32.mxu0 0.0
  %468 = vmatmul.mubr.f32.gmra.mxu0 %v55
  %v469 = vpop.f32.mrf.mxu0
  %v470 = vadd.f32 %v45, %v469
  %v471 = vpop.f32.mrf.mxu0
  %472 = vdwg.mxu0
  %v474 = vsel %vm57, %v25, 0
  %476 = vmatprep.subr.mxu0 0.0
  %477 = vmatpush1.msra.mxu0 0.0
  %478 = vmatprep.subr.mxu0 0.0
  %479 = vmatpush1.msra.mxu0 0.0
  %480 = vmatprep.subr.mxu0 0.0
  %481 = vmatpush1.msra.mxu0 0.0
  %482 = vmatprep.subr.mxu0 0.0
  %483 = vmatpush1.msra.mxu0 0.0
  %484 = vmatprep.subr.mxu0 0.0
  %485 = vmatpush1.msra.mxu0 0.0
  %486 = vmatprep.subr.mxu0 0.0
  %487 = vmatpush1.msra.mxu0 0.0
  %488 = vmatprep.subr.mxu0 0.0
  %489 = vmatpush1.msra.mxu0 0.0
  %490 = vmatprep.subr.mxu0 0.0
  %491 = vmatpush1.msra.mxu0 0.0
  %492 = vmatprep.subr.mxu0 0.0
  %493 = vmatpush1.msra.mxu0 0.0
  %494 = vmatprep.subr.mxu0 0.0
  %495 = vmatpush1.msra.mxu0 0.0
  %496 = vmatprep.subr.mxu0 0.0
  %497 = vmatpush1.msra.mxu0 0.0
  %498 = vmatprep.subr.mxu0 0.0
  %499 = vmatpush1.msra.mxu0 0.0
  %500 = vmatprep.subr.mxu0 0.0
  %501 = vmatpush1.msra.mxu0 0.0
  %502 = vmatprep.subr.mxu0 0.0
  %503 = vmatpush1.msra.mxu0 0.0
  %504 = vmatprep.subr.mxu0 0.0
  %505 = vmatpush1.msra.mxu0 %v474
  %506 = vmatprep.subr.mxu0 0.0
  %507 = vmatpush1.msra.mxu0 %v24
  %508 = vmatprep.subr.mxu0 0.0
  %509 = vmatpush2.msra.mxu0 0.0
  %510 = vmatprep.subr.mxu0 0.0
  %511 = vmatpush2.msra.mxu0 0.0
  %512 = vmatprep.subr.mxu0 0.0
  %513 = vmatpush2.msra.mxu0 0.0
  %514 = vmatprep.subr.mxu0 0.0
  %515 = vmatpush2.msra.mxu0 0.0
  %516 = vmatprep.subr.mxu0 0.0
  %517 = vmatpush2.msra.mxu0 0.0
  %518 = vmatprep.subr.mxu0 0.0
  %519 = vmatpush2.msra.mxu0 0.0
  %520 = vmatprep.subr.mxu0 0.0
  %521 = vmatpush2.msra.mxu0 0.0
  %522 = vmatprep.subr.mxu0 0.0
  %523 = vmatpush2.msra.mxu0 0.0
  %524 = vmatprep.subr.mxu0 0.0
  %525 = vmatpush2.msra.mxu0 0.0
  %526 = vmatprep.subr.mxu0 0.0
  %527 = vmatpush2.msra.mxu0 0.0
  %528 = vmatprep.subr.mxu0 0.0
  %529 = vmatpush2.msra.mxu0 0.0
  %530 = vmatprep.subr.mxu0 0.0
  %531 = vmatpush2.msra.mxu0 0.0
  %532 = vmatprep.subr.mxu0 0.0
  %533 = vmatpush2.msra.mxu0 0.0
  %534 = vmatprep.subr.mxu0 0.0
  %535 = vmatpush2.msra.mxu0 0.0
  %536 = vmatprep.subr.mxu0 0.0
  %537 = vmatpush2.msra.mxu0 0.0
  %538 = vmatprep.subr.mxu0 0.0
  %539 = vmatpush2.msra.mxu0 0.0
  %540 = vmatprep.mubr.f32.mxu0 0.0
  %541 = vmatmul.mubr.f32.gmra.mxu0 %v49
  %v542 = vpop.f32.mrf.mxu0
  %v543 = vadd.f32 %v35, %v542
  %v544 = vpop.f32.mrf.mxu0
  %545 = vmatprep.mubr.f32.mxu0 0.0
  %546 = vmatmul.mubr.f32.gmra.mxu0 %v52
  %v547 = vpop.f32.mrf.mxu0
  %v548 = vadd.f32 %v40, %v547
  %v549 = vpop.f32.mrf.mxu0
  %550 = vmatprep.mubr.f32.mxu0 0.0
  %551 = vmatmul.mubr.f32.gmra.mxu0 %v55
  %v552 = vpop.f32.mrf.mxu0
  %v553 = vadd.f32 %v45, %v552
  %v554 = vpop.f32.mrf.mxu0
  %555 = vdwg.mxu0
  %vm556 = vcmp.gt.f32.partialorder %v128, 0.0
  %vm557 = vcmp.gt.f32.partialorder %v133, 0.0
  %vm558 = vcmp.gt.f32.partialorder %v138, 0.0
  %vm559 = vcmp.gt.f32.partialorder %v211, 0.0
  %vm560 = vcmp.gt.f32.partialorder %v216, 0.0
  %vm561 = vcmp.gt.f32.partialorder %v221, 0.0
  %vm562 = vcmp.gt.f32.partialorder %v294, 0.0
  %vm563 = vcmp.gt.f32.partialorder %v299, 0.0
  %vm564 = vcmp.gt.f32.partialorder %v304, 0.0
  %vm565 = vcmp.gt.f32.partialorder %v377, 0.0
  %vm566 = vcmp.gt.f32.partialorder %v382, 0.0
  %vm567 = vcmp.gt.f32.partialorder %v387, 0.0
  %vm568 = vcmp.gt.f32.partialorder %v460, 0.0
  %vm569 = vcmp.gt.f32.partialorder %v465, 0.0
  %vm570 = vcmp.gt.f32.partialorder %v470, 0.0
  %vm571 = vcmp.gt.f32.partialorder %v543, 0.0
  %vm572 = vcmp.gt.f32.partialorder %v548, 0.0
  %vm573 = vcmp.gt.f32.partialorder %v553, 0.0
  %v574 = vmul.f32 %v128, 0.67
  %v575 = vmul.f32 %v133, 0.67
  %v576 = vmul.f32 %v138, 0.67
  %v577 = vmul.f32 %v211, 0.67
  %v578 = vmul.f32 %v216, 0.67
  %v579 = vmul.f32 %v221, 0.67
  %v580 = vmul.f32 %v294, 0.67
  %v581 = vmul.f32 %v299, 0.67
  %v582 = vmul.f32 %v304, 0.67
  %v583 = vmul.f32 %v377, 0.67
  %v584 = vmul.f32 %v382, 0.67
  %v585 = vmul.f32 %v387, 0.67
  %v586 = vmul.f32 %v460, 0.67
  %v587 = vmul.f32 %v465, 0.67
  %v588 = vmul.f32 %v470, 0.67
  %v589 = vmul.f32 %v543, 0.67
  %v590 = vmul.f32 %v548, 0.67
  %v591 = vmul.f32 %v553, 0.67
  %v592 = vsel %vm556, %v128, %v574
  %v593 = vsel %vm557, %v133, %v575
  %v594 = vsel %vm558, %v138, %v576
  %v595 = vsel %vm559, %v211, %v577
  %v596 = vsel %vm560, %v216, %v578
  %v597 = vsel %vm561, %v221, %v579
  %v598 = vsel %vm562, %v294, %v580
  %v599 = vsel %vm563, %v299, %v581
  %v600 = vsel %vm564, %v304, %v582
  %v601 = vsel %vm565, %v377, %v583
  %v602 = vsel %vm566, %v382, %v584
  %v603 = vsel %vm567, %v387, %v585
  %v604 = vsel %vm568, %v460, %v586
  %v605 = vsel %vm569, %v465, %v587
  %v606 = vsel %vm570, %v470, %v588
  %v607 = vsel %vm571, %v543, %v589
  %v608 = vsel %vm572, %v548, %v590
  %v609 = vsel %vm573, %v553, %v591
  %vm610 = vcmask 523264
  %611 = vst.msk [vmem:[%s3] sm:$0xff] %vm610, %v592
  %612 = vst.msk [vmem:[%s3 + $0x8] sm:$0xff] %vm610, %v593
  %vm613 = vcmask 519168
  %614 = vst.msk [vmem:[%s3 + $0x10] sm:$0xf] %vm613, %v594
  %615 = vst.msk [vmem:[%s3 + $0x18] sm:$0xff] %vm610, %v595
  %616 = vst.msk [vmem:[%s3 + $0x20] sm:$0xff] %vm610, %v596
  %617 = vst.msk [vmem:[%s3 + $0x28] sm:$0xf] %vm613, %v597
  %618 = vst.msk [vmem:[%s3 + $0x30] sm:$0xff] %vm610, %v598
  %619 = vst.msk [vmem:[%s3 + $0x38] sm:$0xff] %vm610, %v599
  %620 = vst.msk [vmem:[%s3 + $0x40] sm:$0xf] %vm613, %v600
  %621 = vst.msk [vmem:[%s3 + $0x48] sm:$0xff] %vm610, %v601
  %622 = vst.msk [vmem:[%s3 + $0x50] sm:$0xff] %vm610, %v602
  %623 = vst.msk [vmem:[%s3 + $0x58] sm:$0xf] %vm613, %v603
  %624 = vst.msk [vmem:[%s3 + $0x60] sm:$0xff] %vm610, %v604
  %625 = vst.msk [vmem:[%s3 + $0x68] sm:$0xff] %vm610, %v605
  %626 = vst.msk [vmem:[%s3 + $0x70] sm:$0xf] %vm613, %v606
  %627 = vst.msk [vmem:[%s3 + $0x78] sm:$0xff] %vm610, %v607
  %628 = vst.msk [vmem:[%s3 + $0x80] sm:$0xff] %vm610, %v608
  %629 = vst.msk [vmem:[%s3 + $0x88] sm:$0xf] %vm613, %v609
  // Predicated region
  $region14: #{model_forward.1} parent=0 // pred_check
    _
  $region15: #{model_forward.1} parent=0 // pred_check_branch
    %631 = sbr.rel (0) target = $region17
  $region16: #{model_forward.1} parent=0 // pred_region
    _
  $region17: #{model_forward.1} parent=0 // pred_fallthru
    _
  // Predicated region
  $region18: #{model_forward.1} parent=0 // pred_check
    _
  $region19: #{model_forward.1} parent=0 // pred_check_branch
    %633 = sbr.rel (0) target = $region21
  $region20: #{model_forward.1} parent=0 // pred_region
    _
  $region21: #{model_forward.1} parent=0 // pred_fallthru
    _

</llo_original>
